<compile_context>
chip_gen: v7x
topology: tpu7x:2x2x1
jax: 0.10.0
libtpu: 0.0.40
codegen_flags: <defaults>
</compile_context>

<pallas_src>
import functools

import jax
import jax.numpy as jnp
from jax.experimental import pallas as pl
from jax.experimental.pallas import tpu as pltpu

EPS = 1e-5            # nn.LayerNorm default eps
BF16 = jnp.bfloat16
MASK_FILL = 1e9       # additive-mask magnitude (bf16/f32-safe stand-in for -inf)


def _layernorm(x, gamma=None, beta=None):
    mu = jnp.mean(x, axis=-1, keepdims=True)
    var = jnp.mean((x - mu) ** 2, axis=-1, keepdims=True)
    xn = (x - mu) * jax.lax.rsqrt(var + EPS)
    if gamma is not None:
        xn = xn * gamma + beta
    return xn


# ----------------------------- generation-aware knobs -----------------------------
@functools.lru_cache(maxsize=None)
def _vmem_limit_bytes():
    """Physical VMEM minus headroom; conservative fallback if query fails."""
    cap = 64 * 1024 * 1024
    try:
        info = pltpu.get_tpu_info()
        c = getattr(info, "vmem_capacity_bytes", None)
        if c:
            cap = int(c)
    except Exception:
        pass
    return int(max(32 * 1024 * 1024, cap - 12 * 1024 * 1024))


@functools.lru_cache(maxsize=None)
def _min_grid_points():
    """>=2 grid points only matters on 2-TensorCore parts (v7x)."""
    try:
        kind = jax.devices()[0].device_kind.lower()
        if "v7" in kind:
            return 2
    except Exception:
        pass
    return 1


def _even_tile(total, target):
    """Largest tile <= target that evenly divides `total` (multiple of 8), else `total`."""
    if total <= target:
        return total
    t = target - (target % 8)
    while t >= 8:
        if total % t == 0:
            return t
        t -= 8
    return total


def _batch_tile(b, target=4):
    """Batch tile dividing b; only force >=2 grid points when the chip has 2 TCs."""
    bt = min(b, target)
    while b % bt:
        bt -= 1
    if _min_grid_points() > 1 and b > 1 and b // bt < 2:
        bt2 = max(1, b // 2)
        while b % bt2:
            bt2 -= 1
        bt = bt2
    return bt


def _mlp_chunk(hidden, target=1024):
    """Largest multiple-of-128 chunk <= target that divides `hidden`, else `hidden`."""
    if hidden <= target:
        return hidden
    c = target - (target % 128)
    while c >= 128:
        if hidden % c == 0:
            return c
        c -= 128
    return hidden


def _const_spec(shape):
    """BlockSpec for a grid-constant weight/bias: single-buffered (no duplicate copy)."""
    return pl.BlockSpec(shape, lambda b: (0,) * len(shape),
                        pipeline_mode=pl.Buffered(1))


# ----------------------------- patch-embed / linear kernel -----------------------------
def _linear_kernel(x_ref, w_ref, b_ref, o_ref):
    o_ref[...] = (
        jnp.dot(x_ref[...], w_ref[...], preferred_element_type=jnp.float32)
        + b_ref[...]
    )


def linear(x_bf16, w, b, *, tile_m=512):
    """x: (M, K) bf16, w: (K, N) bf16, b: (1, N) f32 -> (M, N) f32, tiled over M."""
    M, K = x_bf16.shape
    N = w.shape[1]
    tm = _even_tile(M, tile_m)
    return pl.pallas_call(
        _linear_kernel,
        out_shape=jax.ShapeDtypeStruct((M, N), jnp.float32),
        grid=(M // tm,),
        in_specs=[
            pl.BlockSpec((tm, K), lambda i: (i, 0)),
            _const_spec((K, N)),
            _const_spec((1, N)),
        ],
        out_specs=pl.BlockSpec((tm, N), lambda i: (i, 0)),
        compiler_params=pltpu.CompilerParams(
            dimension_semantics=("parallel",),
            vmem_limit_bytes=_vmem_limit_bytes(),
        ),
    )(x_bf16, w, b)


def patch_embed(images, patch_w, patch_b, patch):
    """Conv2d(kernel=stride=patch) == patch extraction + matmul."""
    B, Cin, Hs, Ws = images.shape
    C = patch_b.shape[-1]
    nph, npw = Hs // patch, Ws // patch
    p = images.reshape(B, Cin, nph, patch, npw, patch)
    p = p.transpose(0, 2, 4, 1, 3, 5).reshape(B * nph * npw, Cin * patch * patch)
    out = linear(p.astype(BF16), patch_w, patch_b)      # bf16 slab halves HBM read
    return out.reshape(B, nph * npw, C)


# ----------------------------- PerBlockAgent kernel -----------------------------
def _agent_kernel(x_ref, pol_ref, wq_ref, bq_ref, wk_ref, bk_ref, o_ref,
                  *, num_heads, scale):
    Bt, N, C = x_ref.shape
    H = num_heads
    hd = C // H

    x = x_ref[...]                              # (Bt, N, C)
    pol = pol_ref[...].reshape(Bt, N)           # (Bt, N) 0/1 prev_policy
    x = x * pol[:, :, None]                     # x * prev_policy.unsqueeze(2)
    xn = _layernorm(x)                          # LayerNorm(elementwise_affine=False)
    xnb = xn.astype(BF16)

    # Only K (all tokens) and the cls-token row of Q are consumed; V is never used.
    k = jnp.dot(xnb.reshape(Bt * N, C), wk_ref[...],
                preferred_element_type=jnp.float32) + bk_ref[...]          # (Bt*N, C)
    q0 = jnp.dot(xnb[:, 0, :], wq_ref[...],
                 preferred_element_type=jnp.float32) + bq_ref[...]         # (Bt, C)

    k4 = k.reshape(Bt, N, H, hd)
    q4 = q0.reshape(Bt, 1, H, hd)
    logits = jnp.sum(k4 * q4, axis=-1) * scale                             # (Bt, N, H)
    probs = jnp.mean(jax.nn.sigmoid(logits), axis=-1)                      # (Bt, N)
    probs = probs * pol                                                    # attn * prev_policy
    o_ref[...] = probs.reshape(Bt, 1, N)


def agent_forward(x, prev_policy, gp, *, num_heads, scale):
    B, N, C = x.shape
    bt = _batch_tile(B)
    kernel = functools.partial(_agent_kernel, num_heads=num_heads, scale=scale)
    pol3 = prev_policy.reshape(B, 1, N)
    out = pl.pallas_call(
        kernel,
        out_shape=jax.ShapeDtypeStruct((B, 1, N), jnp.float32),
        grid=(B // bt,),
        in_specs=[
            pl.BlockSpec((bt, N, C), lambda b: (b, 0, 0)),
            pl.BlockSpec((bt, 1, N), lambda b: (b, 0, 0)),
            _const_spec((C, C)),
            _const_spec((1, C)),
            _const_spec((C, C)),
            _const_spec((1, C)),
        ],
        out_specs=pl.BlockSpec((bt, 1, N), lambda b: (b, 0, 0)),
        compiler_params=pltpu.CompilerParams(
            dimension_semantics=("parallel",),
            vmem_limit_bytes=_vmem_limit_bytes(),
        ),
    )(x, pol3, gp['agent_wq'], gp['agent_bq'], gp['agent_wk'], gp['agent_bk'])
    return out.reshape(B, N)


# ----------------------------- transformer Block kernel -----------------------------
def _block_kernel(x_ref, pol_ref,
                  g1_ref, b1_ref, wqkv_ref, bqkv_ref, wproj_ref, bproj_ref,
                  g2_ref, b2_ref, wfc1_ref, bfc1_ref, wfc2_ref, bfc2_ref,
                  o_ref, *, num_heads, scale, apply_policy, mlp_chunk):
    Bt, N, C = x_ref.shape
    H = num_heads
    hd = C // H

    x = x_ref[...]                              # (Bt, N, C) f32 residual stream
    pol = pol_ref[...].reshape(Bt, N)           # (Bt, N) exact 0/1 policy

    if apply_policy:                            # sample_pos: first block of each group only
        x = x * pol[:, :, None]

    # mask built once per tile, additive form (never materialized in HBM):
    #   pol_outer == policy.unsqueeze(2) @ policy.unsqueeze(1)
    pol_outer = pol[:, :, None] * pol[:, None, :]                          # (Bt, N, N)
    mask_add = (pol_outer - 1.0) * MASK_FILL                               # 0 kept / -1e9 dropped

    x2 = x.reshape(Bt * N, C)

    # ---- attention: token-wise matmuls fused over the whole batch tile ----
    xn = _layernorm(x2, g1_ref[...], b1_ref[...])
    qkv = jnp.dot(xn.astype(BF16), wqkv_ref[...],
                  preferred_element_type=jnp.float32) + bqkv_ref[...]      # (Bt*N, 3C)

    def to_heads(a):  # one up-front relayout to head-major (Bt*H, N, hd) bf16
        return (a.reshape(Bt, N, H, hd).transpose(0, 2, 1, 3)
                 .reshape(Bt * H, N, hd).astype(BF16))

    q = to_heads(qkv[:, :C])
    k = to_heads(qkv[:, C:2 * C])
    v = to_heads(qkv[:, 2 * C:])

    # batched score matmul over all images & heads at once (single batch dim on MXU)
    s = jnp.einsum('gnd,gmd->gnm', q, k,
                   preferred_element_type=jnp.float32) * scale             # (Bt*H, N, N)
    s = s.reshape(Bt, H, N, N) + mask_add[:, None, :, :]   # masked_fill(mask==0, -inf)
    s = s - jnp.max(s, axis=-1, keepdims=True)
    p = jnp.exp(s)
    p = p * pl.reciprocal(jnp.sum(p, axis=-1, keepdims=True), approx=True)
    p = p * pol_outer[:, None, :, :]                       # masked_fill(mask==0, 0)

    o = jnp.einsum('gnm,gmd->gnd', p.reshape(Bt * H, N, N).astype(BF16), v,
                   preferred_element_type=jnp.float32)                     # (Bt*H, N, hd)
    attn = o.reshape(Bt, H, N, hd).transpose(0, 2, 1, 3).reshape(Bt * N, C)

    attn = jnp.dot(attn.astype(BF16), wproj_ref[...],
                   preferred_element_type=jnp.float32) + bproj_ref[...]
    x2 = x2 + attn

    # ---- MLP, tiled over the hidden dimension (full (Bt*N, Hd) never live) ----
    xn2 = _layernorm(x2, g2_ref[...], b2_ref[...]).astype(BF16)
    Hd = wfc1_ref.shape[1]
    y = jnp.zeros((Bt * N, C), jnp.float32)
    for lo in range(0, Hd, mlp_chunk):
        h = (jnp.dot(xn2, wfc1_ref[:, lo:lo + mlp_chunk],
                     preferred_element_type=jnp.float32)
             + bfc1_ref[:, lo:lo + mlp_chunk])
        h = jax.nn.gelu(h, approximate=False)              # timm Mlp default: exact GELU
        y = y + jnp.dot(h.astype(BF16), wfc2_ref[lo:lo + mlp_chunk, :],
                        preferred_element_type=jnp.float32)
    y = y + bfc2_ref[...]
    o_ref[...] = (x2 + y).reshape(Bt, N, C)


def transformer_block(x, policy, bp, *, num_heads, scale, apply_policy):
    B, N, C = x.shape
    Hd = bp['fc1_w'].shape[1]
    bt = _batch_tile(B)
    mlp_chunk = _mlp_chunk(Hd)
    kernel = functools.partial(_block_kernel, num_heads=num_heads, scale=scale,
                               apply_policy=apply_policy, mlp_chunk=mlp_chunk)
    pol3 = policy.reshape(B, 1, N)

    return pl.pallas_call(
        kernel,
        out_shape=jax.ShapeDtypeStruct((B, N, C), jnp.float32),
        grid=(B // bt,),
        in_specs=[
            pl.BlockSpec((bt, N, C), lambda b: (b, 0, 0)),
            pl.BlockSpec((bt, 1, N), lambda b: (b, 0, 0)),
            _const_spec((1, C)), _const_spec((1, C)),
            _const_spec((C, 3 * C)), _const_spec((1, 3 * C)),
            _const_spec((C, C)), _const_spec((1, C)),
            _const_spec((1, C)), _const_spec((1, C)),
            _const_spec((C, Hd)), _const_spec((1, Hd)),
            _const_spec((Hd, C)), _const_spec((1, C)),
        ],
        out_specs=pl.BlockSpec((bt, N, C), lambda b: (b, 0, 0)),
        compiler_params=pltpu.CompilerParams(
            dimension_semantics=("parallel",),
            vmem_limit_bytes=_vmem_limit_bytes(),
        ),
    )(x, pol3, bp['ln1_g'], bp['ln1_b'], bp['qkv_w'], bp['qkv_b'],
      bp['proj_w'], bp['proj_b'], bp['ln2_g'], bp['ln2_b'],
      bp['fc1_w'], bp['fc1_b'], bp['fc2_w'], bp['fc2_b'])


# ----------------------------- final norm + head kernel -----------------------------
def _head_kernel(x_ref, g_ref, b_ref, w_ref, bh_ref, o_ref):
    xn = _layernorm(x_ref[...], g_ref[...], b_ref[...])
    o_ref[...] = jnp.dot(xn.astype(BF16), w_ref[...],
                         preferred_element_type=jnp.float32) + bh_ref[...]


def head_forward(x0, norm_g, norm_b, head_w, head_b, num_classes):
    B, C = x0.shape
    ncp = head_w.shape[1]                       # lane-padded to a multiple of 128
    out = pl.pallas_call(
        _head_kernel,
        out_shape=jax.ShapeDtypeStruct((B, ncp), jnp.float32),
        grid=(1,),
        in_specs=[
            pl.BlockSpec((B, C), lambda i: (0, 0)),
            pl.BlockSpec((1, C), lambda i: (0, 0)),
            pl.BlockSpec((1, C), lambda i: (0, 0)),
            pl.BlockSpec((C, ncp), lambda i: (0, 0)),
            pl.BlockSpec((1, ncp), lambda i: (0, 0)),
        ],
        out_specs=pl.BlockSpec((B, ncp), lambda i: (0, 0)),
    )(x0, norm_g, norm_b, head_w, head_b)
    return out[:, :num_classes]


# ----------------------------- full model forward -----------------------------
def vit_forward(params, images, group_size, cl_step=-1):
    C = params['pos_embed'].shape[-1]
    vit_heads = params['vit_heads']
    agent_heads = 6                              # AttnGroup hard-codes num_heads=6
    agent_scale = (C // agent_heads) ** -0.5
    vit_scale = (C // vit_heads) ** -0.5

    # forward_embedding
    x = patch_embed(images, params['patch_w'], params['patch_b'], params['patch'])
    B = x.shape[0]
    cls = jnp.broadcast_to(params['cls_token'], (B, 1, C))
    x = jnp.concatenate([cls, x], axis=1)
    x = x + params['pos_embed']
    N = x.shape[1]

    # forward_inference_features
    policys, probs_list = [], []
    prev_policy = None
    blk_idx = 0
    for step, size in enumerate(group_size):
        mask_flag = (step > cl_step) and (cl_step != -1)
        gp = params['groups'][step]
        pp = prev_policy if prev_policy is not None else jnp.ones((B, N), jnp.float32)

        probs = agent_forward(x, pp, gp, num_heads=agent_heads, scale=agent_scale)
        policy = (probs > 0.5).astype(jnp.float32)
        policy = policy.at[:, :1].set(1.0)
        if mask_flag and prev_policy is not None:
            policy = prev_policy

        # sample_pos (x *= policy) and the mask outer product are fused into the
        # block kernel; only the first block of each group zeroes dropped tokens.
        for j in range(size):
            x = transformer_block(x, policy, params['blocks'][blk_idx],
                                  num_heads=vit_heads, scale=vit_scale,
                                  apply_policy=(j == 0))
            blk_idx += 1

        policys.append(policy)
        probs_list.append(probs)
        prev_policy = policy

    # final norm on cls token + classifier head (lane-padded output, sliced back)
    x0 = x[:, 0, :]
    preds = head_forward(x0, params['norm_g'], params['norm_b'],
                         params['head_w'], params['head_b'], params['num_classes'])

    # get_flops
    total = float(sum(group_size))
    flops = jnp.ones((B,), jnp.float32)
    for policy, size in zip(policys, group_size):
        policy_sum = jnp.sum(policy, axis=1) / policy.shape[1]
        flops = flops - (1.0 - policy_sum) * size / total

    return preds, flops, probs_list


# ----------------------------- deterministic parameter init -----------------------------
def init_params(key, *, img_size=16, patch=8, in_chans=3, embed_dim=384,
                depth=2, vit_heads=6, mlp_ratio=4, num_classes=10, num_groups=2):
    keys = iter(jax.random.split(key, 8 + 6 * depth + 4 * num_groups))

    def nrm(shape, scale=0.02, dtype=jnp.float32):
        return (scale * jax.random.normal(next(keys), shape)).astype(dtype)

    num_patches = (img_size // patch) ** 2
    N = num_patches + 1
    hidden = embed_dim * mlp_ratio
    ncp = ((num_classes + 127) // 128) * 128     # lane-pad classifier output

    head_w = nrm((embed_dim, num_classes))
    head_w = jnp.pad(head_w, ((0, 0), (0, ncp - num_classes))).astype(BF16)

    params = {
        'patch': patch,
        'vit_heads': vit_heads,
        'num_classes': num_classes,
        # patch conv (kernel==stride) pre-reshaped to a (Cin*p*p, C) matmul weight
        'patch_w': nrm((in_chans * patch * patch, embed_dim), dtype=BF16),
        'patch_b': nrm((1, embed_dim)),
        'cls_token': nrm((1, 1, embed_dim)),
        'pos_embed': nrm((1, N, embed_dim)),
        'norm_g': jnp.ones((1, embed_dim), jnp.float32),
        'norm_b': jnp.zeros((1, embed_dim), jnp.float32),
        'head_w': head_w,
        'head_b': jnp.zeros((1, ncp), jnp.float32),
        'blocks': [],
        'groups': [],
    }
    for _ in range(depth):
        params['blocks'].append({
            'ln1_g': jnp.ones((1, embed_dim), jnp.float32),
            'ln1_b': jnp.zeros((1, embed_dim), jnp.float32),
            'qkv_w': nrm((embed_dim, 3 * embed_dim), dtype=BF16),
            'qkv_b': jnp.zeros((1, 3 * embed_dim), jnp.float32),
            'proj_w': nrm((embed_dim, embed_dim), dtype=BF16),
            'proj_b': jnp.zeros((1, embed_dim), jnp.float32),
            'ln2_g': jnp.ones((1, embed_dim), jnp.float32),
            'ln2_b': jnp.zeros((1, embed_dim), jnp.float32),
            'fc1_w': nrm((embed_dim, hidden), dtype=BF16),
            'fc1_b': jnp.zeros((1, hidden), jnp.float32),
            'fc2_w': nrm((hidden, embed_dim), dtype=BF16),
            'fc2_b': jnp.zeros((1, embed_dim), jnp.float32),
        })
    for _ in range(num_groups):
        params['groups'].append({
            # only the Q and K thirds of the agent's qk Linear are ever used -> pre-split
            'agent_wq': nrm((embed_dim, embed_dim), dtype=BF16),
            'agent_bq': jnp.zeros((1, embed_dim), jnp.float32),
            'agent_wk': nrm((embed_dim, embed_dim), dtype=BF16),
            'agent_bk': jnp.zeros((1, embed_dim), jnp.float32),
        })
    return params


if __name__ == "__main__":
    key = jax.random.PRNGKey(0)
    k_img, k_par = jax.random.split(key)

    group_size = (1, 1)                       # 2 transformer blocks, 2 agent groups
    # embed_dim=384: smallest dim that is a multiple of both 128 (lane-dense stores)
    # and 6 (agent/vit heads). N=5 (4 patches + cls) stays small for the demo.
    params = init_params(k_par, img_size=16, patch=8, in_chans=3, embed_dim=384,
                         depth=sum(group_size), vit_heads=6, mlp_ratio=4,
                         num_classes=10, num_groups=len(group_size))

    images = jax.random.normal(k_img, (2, 3, 16, 16), dtype=jnp.float32)

    preds, flops, probs = vit_forward(params, images, group_size, cl_step=-1)
    jax.block_until_ready(preds)
    jax.block_until_ready(flops)
    for p in probs:
        jax.block_until_ready(p)

    print("KERNEL_OK")
</pallas_src>

<mosaic_0001>
module attributes {stable_mosaic.version = 11 : i64} {
  func.func @_linear_kernel(%arg0: i32, %arg1: memref<8x192xbf16, #tpu.memory_space<vmem>>, %arg2: memref<192x384xbf16, #tpu.memory_space<vmem>>, %arg3: memref<1x384xf32, #tpu.memory_space<vmem>>, %arg4: memref<8x384xf32, #tpu.memory_space<vmem>>) attributes {dimension_semantics = [#tpu.dimension_semantics<parallel>], iteration_bounds = array<i64: 1>, scalar_prefetch = 0 : i64, scratch_operands = 0 : i64, tpu.core_type = #tpu.core_type<tc>, window_params = [{transform_indices = @transform_0, window_bounds = array<i64: 8, 192>}, {pipeline_mode = #tpu.pipeline_mode<synchronous>, transform_indices = @transform_1, window_bounds = array<i64: 192, 384>}, {pipeline_mode = #tpu.pipeline_mode<synchronous>, transform_indices = @transform_2, window_bounds = array<i64: 1, 384>}, {transform_indices = @transform_3, window_bounds = array<i64: 8, 384>}]} {
    %c0 = arith.constant 0 : index
    %c0_0 = arith.constant 0 : index
    %0 = vector.load %arg1[%c0, %c0_0] : memref<8x192xbf16, #tpu.memory_space<vmem>>, vector<8x192xbf16>
    %c0_1 = arith.constant 0 : index
    %c0_2 = arith.constant 0 : index
    %1 = vector.load %arg2[%c0_1, %c0_2] : memref<192x384xbf16, #tpu.memory_space<vmem>>, vector<192x384xbf16>
    %cst = arith.constant dense<0.000000e+00> : vector<8x384xf32>
    %2 = tpu.matmul %0, %1, %cst {dimension_numbers = #tpu.dot_dimension_numbers<[1], [0], [0], [1], [0, 0, 1, 1], [], []>} : vector<8x192xbf16>, vector<192x384xbf16>, vector<8x384xf32> -> vector<8x384xf32>
    %c0_3 = arith.constant 0 : index
    %c0_4 = arith.constant 0 : index
    %3 = vector.load %arg3[%c0_3, %c0_4] : memref<1x384xf32, #tpu.memory_space<vmem>>, vector<1x384xf32>
    %4 = vector.broadcast %3 : vector<1x384xf32> to vector<8x384xf32>
    %5 = arith.addf %2, %4 : vector<8x384xf32>
    %c0_5 = arith.constant 0 : index
    %c0_6 = arith.constant 0 : index
    %6 = vector.load %arg4[%c0_5, %c0_6] : memref<8x384xf32, #tpu.memory_space<vmem>>, vector<8x384xf32>
    tpu.vector_store %arg4[%c0_5, %c0_6], %5 {strides = array<i32>} : memref<8x384xf32, #tpu.memory_space<vmem>>, vector<8x384xf32>,
    return
  }
  func.func @transform_0(%arg0: i32) -> (i32, i32) {
    %c0_i32 = arith.constant 0 : i32
    %c0_i32_0 = arith.constant 0 : i32
    return %arg0, %c0_i32 : i32, i32
  }
  func.func @transform_1(%arg0: i32) -> (i32, i32) {
    %c0_i32 = arith.constant 0 : i32
    %c0_i32_0 = arith.constant 0 : i32
    %c0_i32_1 = arith.constant 0 : i32
    return %c0_i32, %c0_i32_0 : i32, i32
  }
  func.func @transform_2(%arg0: i32) -> (i32, i32) {
    %c0_i32 = arith.constant 0 : i32
    %c0_i32_0 = arith.constant 0 : i32
    %c0_i32_1 = arith.constant 0 : i32
    return %c0_i32, %c0_i32_0 : i32, i32
  }
  func.func @transform_3(%arg0: i32) -> (i32, i32) {
    %c0_i32 = arith.constant 0 : i32
    %c0_i32_0 = arith.constant 0 : i32
    return %arg0, %c0_i32 : i32, i32
  }
}

</mosaic_0001>

<llo_original>
// kernel: tpu_custom_call.1
$region0: #{tpu_custom_call.1}
  #allocation0 [shape = 'u32[]', space=smem, size = 0x4, offset = 0x4, fixed_abs, tag = 'smem constant byte address 0x4 - core index']
  #allocation1 [shape = 'u32[144,128]{1,0:T(1,128)}', space=vmem, size = 0x12000, scoped, tag = 'internal scratch']
  %s0 = inlined_call_operand.hbm [shape: bf16[8,192], index: 0, kind: input, shape index: {}]
  %s1 = inlined_call_operand.hbm [shape: bf16[192,384], index: 1, kind: input, shape index: {}]
  %s2 = inlined_call_operand.vmem [shape: f32[1,384], index: 2, kind: input, shape index: {}]
  %s3 = inlined_call_operand.hbm [shape: f32[8,384], index: 3, kind: output, shape index: {}]
  %s4 = sld [smem:[#allocation0]]
  $region30: #{tpu_custom_call.1} parent=0
    _
  %s6 = ssub.s32 1, %s4
  %s7 = scalar_select 0, %s6, %s4
  $region1: #{tpu_custom_call.1} parent=0
    #allocation2 [shape = 'u8[4096]{0}', space=vmem, size = 0x1000, scoped, tag = 'input window, operand 0, single buffered']
    #allocation3 [shape = 's32[1]{0}', space=sflag, size = 0x4, scoped, tag = 'scoped memory for tpu_custom_call.1']
    #allocation4 [shape = 's32[1]{0}', space=sflag, size = 0x4, scoped, tag = 'scoped memory for tpu_custom_call.1']
    #allocation5 [shape = 'u8[147456]{0}', space=vmem, size = 0x24000, scoped, tag = 'input window, operand 1, single buffered']
    #allocation6 [shape = 's32[1]{0}', space=sflag, size = 0x4, scoped, tag = 'scoped memory for tpu_custom_call.1']
    #allocation7 [shape = 'u8[12288]{0}', space=vmem, size = 0x3000, scoped, tag = 'output window, operand 0, single buffered']
    %8 = vsyncpa [#allocation3], 0
    %9 = vsyncpa [#allocation6], 0
    %10 = vsyncpa [#allocation4], 0
    // Predicated region
    $region2: #{tpu_custom_call.1} parent=1 // pred_check
      _
    $region3: #{tpu_custom_call.1} parent=1 // pred_check_branch
      %12 = sbr.rel (0) target = $region5
    $region4: #{tpu_custom_call.1} parent=1 // pred_region
      %s14 = ssub.s32 128, 128
      %15 = vsyncadd [#allocation3], %s14
      %s17 = sshll.u32 [#allocation2], 4
      %s18 = int_to_ptr.vmem [resolvable:$true] %s17
      %20 = dma.hbm_to_vmem [thread:$0]  %s0, 128, %s18, [#allocation3]
    $region5: #{tpu_custom_call.1} parent=1 // pred_fallthru
      _
    // Predicated region
    $region6: #{tpu_custom_call.1} parent=1 // pred_check
      _
    $region7: #{tpu_custom_call.1} parent=1 // pred_check_branch
      %22 = sbr.rel (0) target = $region9
    $region8: #{tpu_custom_call.1} parent=1 // pred_region
      %s24 = ssub.s32 4608, 4608
      %25 = vsyncadd [#allocation6], %s24
      %s26 = sshll.u32 [#allocation5], 4
      %s27 = int_to_ptr.vmem [resolvable:$true] %s26
      %32 = dma.hbm_to_vmem [thread:$0]  %s1, 4608, %s27, [#allocation6], 192, 192, 12
    $region9: #{tpu_custom_call.1} parent=1 // pred_fallthru
      _
    // Predicated region
    $region10: #{tpu_custom_call.1} parent=1 // pred_check
      _
    $region11: #{tpu_custom_call.1} parent=1 // pred_check_branch
      %34 = sbr.rel (0) target = $region13
    $region12: #{tpu_custom_call.1} parent=1 // pred_region
      _
    $region13: #{tpu_custom_call.1} parent=1 // pred_fallthru
      _
    // Predicated region
    $region14: #{tpu_custom_call.1} parent=1 // pred_check
      _
    $region15: #{tpu_custom_call.1} parent=1 // pred_check_branch
      %36 = sbr.rel (0) target = $region17
    $region16: #{tpu_custom_call.1} parent=1 // pred_region
      %37 = dma.done [#allocation3], 128
    $region17: #{tpu_custom_call.1} parent=1 // pred_fallthru
      _
    // Predicated region
    $region18: #{tpu_custom_call.1} parent=1 // pred_check
      _
    $region19: #{tpu_custom_call.1} parent=1 // pred_check_branch
      %39 = sbr.rel (0) target = $region21
    $region20: #{tpu_custom_call.1} parent=1 // pred_region
      %40 = dma.done [#allocation6], 4608
    $region21: #{tpu_custom_call.1} parent=1 // pred_fallthru
      _
    %v42 = vld [vmem:[#allocation2] sm:$0xff]
    %v43 = vld [vmem:[#allocation5] sm:$0xff]
    %v44 = vld [vmem:[#allocation5 + $0x8] sm:$0xf]
    %v45 = vld [vmem:[#allocation5 + $0xc] sm:$0xff]
    %v46 = vld [vmem:[#allocation5 + $0x14] sm:$0xf]
    %v47 = vld [vmem:[#allocation5 + $0x18] sm:$0xff]
    %v48 = vld [vmem:[#allocation5 + $0x20] sm:$0xf]
    %v49 = vld [vmem:[#allocation5 + $0x24] sm:$0xff]
    %v50 = vld [vmem:[#allocation5 + $0x2c] sm:$0xf]
    %v51 = vld [vmem:[#allocation5 + $0x30] sm:$0xff]
    %v52 = vld [vmem:[#allocation5 + $0x38] sm:$0xf]
    %v53 = vld [vmem:[#allocation5 + $0x3c] sm:$0xff]
    %v54 = vld [vmem:[#allocation5 + $0x44] sm:$0xf]
    %v55 = vld [vmem:[#allocation5 + $0x48] sm:$0xff]
    %v56 = vld [vmem:[#allocation5 + $0x50] sm:$0xf]
    %v57 = vld [vmem:[#allocation5 + $0x54] sm:$0xff]
    %v58 = vld [vmem:[#allocation5 + $0x5c] sm:$0xf]
    %v59 = vld [vmem:[#allocation5 + $0x60] sm:$0xff]
    %v60 = vld [vmem:[#allocation5 + $0x68] sm:$0xf]
    %v61 = vld [vmem:[#allocation5 + $0x6c] sm:$0xff]
    %v62 = vld [vmem:[#allocation5 + $0x74] sm:$0xf]
    %v63 = vld [vmem:[#allocation5 + $0x78] sm:$0xff]
    %v64 = vld [vmem:[#allocation5 + $0x80] sm:$0xf]
    %v65 = vld [vmem:[#allocation5 + $0x84] sm:$0xff]
    %v66 = vld [vmem:[#allocation5 + $0x8c] sm:$0xf]
    %v67 = vld [vmem:[#allocation5 + $0x90] sm:$0xff]
    %v68 = vld [vmem:[#allocation5 + $0x98] sm:$0xf]
    %v69 = vld [vmem:[#allocation5 + $0x9c] sm:$0xff]
    %v70 = vld [vmem:[#allocation5 + $0xa4] sm:$0xf]
    %v71 = vld [vmem:[#allocation5 + $0xa8] sm:$0xff]
    %v72 = vld [vmem:[#allocation5 + $0xb0] sm:$0xf]
    %v73 = vld [vmem:[#allocation5 + $0xb4] sm:$0xff]
    %v74 = vld [vmem:[#allocation5 + $0xbc] sm:$0xf]
    %v75 = vld [vmem:[#allocation5 + $0xc0] sm:$0xff]
    %v76 = vld [vmem:[#allocation5 + $0xc8] sm:$0xf]
    %v77 = vld [vmem:[#allocation5 + $0xcc] sm:$0xff]
    %v78 = vld [vmem:[#allocation5 + $0xd4] sm:$0xf]
    %v79 = vld [vmem:[#allocation5 + $0xd8] sm:$0xff]
    %v80 = vld [vmem:[#allocation5 + $0xe0] sm:$0xf]
    %v81 = vld [vmem:[#allocation5 + $0xe4] sm:$0xff]
    %v82 = vld [vmem:[#allocation5 + $0xec] sm:$0xf]
    %v83 = vld [vmem:[#allocation5 + $0xf0] sm:$0xff]
    %v84 = vld [vmem:[#allocation5 + $0xf8] sm:$0xf]
    %v85 = vld [vmem:[#allocation5 + $0xfc] sm:$0xff]
    %v86 = vld [vmem:[#allocation5 + $0x104] sm:$0xf]
    %v87 = vld [vmem:[#allocation5 + $0x108] sm:$0xff]
    %v88 = vld [vmem:[#allocation5 + $0x110] sm:$0xf]
    %v89 = vld [vmem:[#allocation5 + $0x114] sm:$0xff]
    %v90 = vld [vmem:[#allocation5 + $0x11c] sm:$0xf]
    %v91 = vld [vmem:[%s2] sm:$0x7]
    %v93 = vlaneseq
    %v94 = vshrl.u32 %v93, 7
    %v95 = vsub.s32 0, %v94
    %v96 = vrot.slane %v91, %v95
    %v97 = vlaneseq
    %v98 = vshrl.u32 %v97, 7
    %v99 = vsub.s32 1, %v98
    %v100 = vrot.slane %v91, %v99
    %v101 = vlaneseq
    %v102 = vshrl.u32 %v101, 7
    %v103 = vsub.s32 2, %v102
    %v104 = vrot.slane %v91, %v103
    %v109 = vunpack.c.l.b16 %v42
    %v110 = vunpack.c.h.b16 %v42
    %v111 = vpack.c.b16 %v109, %v109
    %v112 = vpack.c.b16 %v110, %v110
    %v162 = vunpack.c.l.b16 %v43
    %v163 = vunpack.c.h.b16 %v43
    %v164 = vunpack.c.l.b16 %v44
    %v165 = vunpack.c.l.b16 %v45
    %v166 = vunpack.c.h.b16 %v45
    %v167 = vunpack.c.l.b16 %v46
    %v168 = vunpack.c.l.b16 %v47
    %v169 = vunpack.c.h.b16 %v47
    %v170 = vunpack.c.l.b16 %v48
    %v171 = vunpack.c.l.b16 %v49
    %v172 = vunpack.c.h.b16 %v49
    %v173 = vunpack.c.l.b16 %v50
    %v174 = vunpack.c.l.b16 %v51
    %v175 = vunpack.c.h.b16 %v51
    %v176 = vunpack.c.l.b16 %v52
    %v177 = vunpack.c.l.b16 %v53
    %v178 = vunpack.c.h.b16 %v53
    %v179 = vunpack.c.l.b16 %v54
    %v180 = vunpack.c.l.b16 %v55
    %v181 = vunpack.c.h.b16 %v55
    %v182 = vunpack.c.l.b16 %v56
    %v183 = vunpack.c.l.b16 %v57
    %v184 = vunpack.c.h.b16 %v57
    %v185 = vunpack.c.l.b16 %v58
    %v186 = vunpack.c.l.b16 %v59
    %v187 = vunpack.c.h.b16 %v59
    %v188 = vunpack.c.l.b16 %v60
    %v189 = vunpack.c.l.b16 %v61
    %v190 = vunpack.c.h.b16 %v61
    %v191 = vunpack.c.l.b16 %v62
    %v192 = vunpack.c.l.b16 %v63
    %v193 = vunpack.c.h.b16 %v63
    %v194 = vunpack.c.l.b16 %v64
    %v195 = vunpack.c.l.b16 %v65
    %v196 = vunpack.c.h.b16 %v65
    %v197 = vunpack.c.l.b16 %v66
    %v198 = vunpack.c.l.b16 %v67
    %v199 = vunpack.c.h.b16 %v67
    %v200 = vunpack.c.l.b16 %v68
    %v201 = vunpack.c.l.b16 %v69
    %v202 = vunpack.c.h.b16 %v69
    %v203 = vunpack.c.l.b16 %v70
    %v204 = vunpack.c.l.b16 %v71
    %v205 = vunpack.c.h.b16 %v71
    %v206 = vunpack.c.l.b16 %v72
    %v207 = vunpack.c.l.b16 %v73
    %v208 = vunpack.c.h.b16 %v73
    %v209 = vunpack.c.l.b16 %v74
    %v210 = vunpack.c.l.b16 %v75
    %v211 = vunpack.c.h.b16 %v75
    %v212 = vunpack.c.l.b16 %v76
    %v213 = vunpack.c.l.b16 %v77
    %v214 = vunpack.c.h.b16 %v77
    %v215 = vunpack.c.l.b16 %v78
    %v216 = vunpack.c.l.b16 %v79
    %v217 = vunpack.c.h.b16 %v79
    %v218 = vunpack.c.l.b16 %v80
    %v219 = vunpack.c.l.b16 %v81
    %v220 = vunpack.c.h.b16 %v81
    %v221 = vunpack.c.l.b16 %v82
    %v222 = vunpack.c.l.b16 %v83
    %v223 = vunpack.c.h.b16 %v83
    %v224 = vunpack.c.l.b16 %v84
    %v225 = vunpack.c.l.b16 %v85
    %v226 = vunpack.c.h.b16 %v85
    %v227 = vunpack.c.l.b16 %v86
    %v228 = vunpack.c.l.b16 %v87
    %v229 = vunpack.c.h.b16 %v87
    %v230 = vunpack.c.l.b16 %v88
    %v231 = vunpack.c.l.b16 %v89
    %v232 = vunpack.c.h.b16 %v89
    %v233 = vunpack.c.l.b16 %v90
    %v234 = vpack.c.b16 %v165, %v162
    %v235 = vpack.c.b16 %v166, %v163
    %v236 = vpack.c.b16 %v167, %v164
    %v237 = vpack.c.b16 %v171, %v168
    %v238 = vpack.c.b16 %v172, %v169
    %v239 = vpack.c.b16 %v173, %v170
    %v240 = vpack.c.b16 %v177, %v174
    %v241 = vpack.c.b16 %v178, %v175
    %v242 = vpack.c.b16 %v179, %v176
    %v243 = vpack.c.b16 %v183, %v180
    %v244 = vpack.c.b16 %v184, %v181
    %v245 = vpack.c.b16 %v185, %v182
    %v246 = vpack.c.b16 %v189, %v186
    %v247 = vpack.c.b16 %v190, %v187
    %v248 = vpack.c.b16 %v191, %v188
    %v249 = vpack.c.b16 %v195, %v192
    %v250 = vpack.c.b16 %v196, %v193
    %v251 = vpack.c.b16 %v197, %v194
    %v252 = vpack.c.b16 %v201, %v198
    %v253 = vpack.c.b16 %v202, %v199
    %v254 = vpack.c.b16 %v203, %v200
    %v255 = vpack.c.b16 %v207, %v204
    %v256 = vpack.c.b16 %v208, %v205
    %v257 = vpack.c.b16 %v209, %v206
    %v258 = vpack.c.b16 %v213, %v210
    %v259 = vpack.c.b16 %v214, %v211
    %v260 = vpack.c.b16 %v215, %v212
    %v261 = vpack.c.b16 %v219, %v216
    %v262 = vpack.c.b16 %v220, %v217
    %v263 = vpack.c.b16 %v221, %v218
    %v264 = vpack.c.b16 %v225, %v222
    %v265 = vpack.c.b16 %v226, %v223
    %v266 = vpack.c.b16 %v227, %v224
    %v267 = vpack.c.b16 %v231, %v228
    %v268 = vpack.c.b16 %v232, %v229
    %v269 = vpack.c.b16 %v233, %v230
    %vm306 = vcmask 523264
    %v308 = vsel %vm306, %v112, 0
    %310 = vmatprep.subr.bf16.mxu0 %v235
    %311 = vmatpush1.bf16.msra.mxu0 %v234
    %312 = vmatprep.subr.bf16.mxu0 %v238
    %313 = vmatpush1.bf16.msra.mxu0 %v237
    %314 = vmatprep.subr.bf16.mxu0 %v241
    %315 = vmatpush1.bf16.msra.mxu0 %v240
    %316 = vmatprep.subr.bf16.mxu0 %v244
    %317 = vmatpush1.bf16.msra.mxu0 %v243
    %318 = vmatprep.subr.bf16.mxu0 %v247
    %319 = vmatpush1.bf16.msra.mxu0 %v246
    %320 = vmatprep.subr.bf16.mxu0 %v250
    %321 = vmatpush1.bf16.msra.mxu0 %v249
    %322 = vmatprep.subr.bf16.mxu0 %v253
    %323 = vmatpush1.bf16.msra.mxu0 %v252
    %324 = vmatprep.subr.bf16.mxu0 %v256
    %325 = vmatpush1.bf16.msra.mxu0 %v255
    %326 = vmatprep.subr.bf16.mxu0 %v259
    %327 = vmatpush1.bf16.msra.mxu0 %v258
    %328 = vmatprep.subr.bf16.mxu0 %v262
    %329 = vmatpush1.bf16.msra.mxu0 %v261
    %330 = vmatprep.subr.bf16.mxu0 %v265
    %331 = vmatpush1.bf16.msra.mxu0 %v264
    %332 = vmatprep.subr.bf16.mxu0 %v268
    %333 = vmatpush1.bf16.msra.mxu0 %v267
    %334 = vmatprep.subr.bf16.mxu0 0
    %335 = vmatpush1.bf16.msra.mxu0 0
    %336 = vmatprep.subr.bf16.mxu0 0
    %337 = vmatpush1.bf16.msra.mxu0 0
    %338 = vmatprep.subr.bf16.mxu0 0
    %339 = vmatpush1.bf16.msra.mxu0 0
    %340 = vmatprep.subr.bf16.mxu0 0
    %341 = vmatpush1.bf16.msra.mxu0 0
    %342 = vmatprep.mubr.bf16.mxu0 %v308
    %343 = vmatmul.mubr.bf16.gmra.mrb[0].mxu0 %v111
    %v344 = vpop.f32.mrb[0].mxu0
    %v345 = vadd.f32 %v96, %v344
    %v346 = vpop.f32.mrb[0].mxu0
    %v347 = vadd.f32 %v100, %v346
    %v348 = vpop.f32.mrb[0].mxu0
    %v349 = vpop.f32.mrb[0].mxu0
    %350 = vdwg.mxu0
    %351 = vmatprep.subr.bf16.mxu0 0
    %352 = vmatpush1.bf16.msra.mxu0 %v236
    %353 = vmatprep.subr.bf16.mxu0 0
    %354 = vmatpush1.bf16.msra.mxu0 %v239
    %355 = vmatprep.subr.bf16.mxu0 0
    %356 = vmatpush1.bf16.msra.mxu0 %v242
    %357 = vmatprep.subr.bf16.mxu0 0
    %358 = vmatpush1.bf16.msra.mxu0 %v245
    %359 = vmatprep.subr.bf16.mxu0 0
    %360 = vmatpush1.bf16.msra.mxu0 %v248
    %361 = vmatprep.subr.bf16.mxu0 0
    %362 = vmatpush1.bf16.msra.mxu0 %v251
    %363 = vmatprep.subr.bf16.mxu0 0
    %364 = vmatpush1.bf16.msra.mxu0 %v254
    %365 = vmatprep.subr.bf16.mxu0 0
    %366 = vmatpush1.bf16.msra.mxu0 %v257
    %367 = vmatprep.subr.bf16.mxu0 0
    %368 = vmatpush1.bf16.msra.mxu0 %v260
    %369 = vmatprep.subr.bf16.mxu0 0
    %370 = vmatpush1.bf16.msra.mxu0 %v263
    %371 = vmatprep.subr.bf16.mxu0 0
    %372 = vmatpush1.bf16.msra.mxu0 %v266
    %373 = vmatprep.subr.bf16.mxu0 0
    %374 = vmatpush1.bf16.msra.mxu0 %v269
    %375 = vmatprep.subr.bf16.mxu0 0
    %376 = vmatpush1.bf16.msra.mxu0 0
    %377 = vmatprep.subr.bf16.mxu0 0
    %378 = vmatpush1.bf16.msra.mxu0 0
    %379 = vmatprep.subr.bf16.mxu0 0
    %380 = vmatpush1.bf16.msra.mxu0 0
    %381 = vmatprep.subr.bf16.mxu0 0
    %382 = vmatpush1.bf16.msra.mxu0 0
    %383 = vmatprep.mubr.bf16.mxu0 %v308
    %384 = vmatmul.mubr.bf16.gmra.mrb[0].mxu0 %v111
    %v385 = vpop.f32.mrb[0].mxu0
    %v386 = vadd.f32 %v104, %v385
    %v387 = vpop.f32.mrb[0].mxu0
    %v388 = vpop.f32.mrb[0].mxu0
    %v389 = vpop.f32.mrb[0].mxu0
    %390 = vdwg.mxu0
    %391 = vst [vmem:[#allocation7] sm:$0xff] %v345
    %392 = vst [vmem:[#allocation7 + $0x8] sm:$0xff] %v347
    %393 = vst [vmem:[#allocation7 + $0x10] sm:$0xff] %v386
    // Predicated region
    $region22: #{tpu_custom_call.1} parent=1 // pred_check
      _
    $region23: #{tpu_custom_call.1} parent=1 // pred_check_branch
      %395 = sbr.rel (0) target = $region25
    $region24: #{tpu_custom_call.1} parent=1 // pred_region
      %s397 = ssub.s32 384, 384
      %398 = vsyncadd [#allocation4], %s397
      %s400 = sshll.u32 [#allocation7], 4
      %s401 = int_to_ptr.vmem [resolvable:$true] %s400
      %403 = dma.vmem_to_hbm [thread:$0]  %s401, 384, %s3, [#allocation4]
    $region25: #{tpu_custom_call.1} parent=1 // pred_fallthru
      _
    // Predicated region
    $region26: #{tpu_custom_call.1} parent=1 // pred_check
      _
    $region27: #{tpu_custom_call.1} parent=1 // pred_check_branch
      %405 = sbr.rel (0) target = $region29
    $region28: #{tpu_custom_call.1} parent=1 // pred_region
      %406 = dma.done [#allocation4], 384
    $region29: #{tpu_custom_call.1} parent=1 // pred_fallthru
      _
    %407 = vsyncpa [#allocation3], 1
    %408 = vsyncpa [#allocation6], 1
    %409 = vsyncpa [#allocation4], 1

</llo_original>
